<compile_context>
chip_gen: v6e
topology: v6e:2x2x1
jax: 0.10.0
libtpu: 0.0.40
codegen_flags: <defaults>
</compile_context>

<pallas_src>
import functools
import math

import jax
import jax.numpy as jnp
from jax.experimental import pallas as pl
from jax.experimental.pallas import tpu as pltpu


# ----------------------------------------------------------------------------
# Kernels
# ----------------------------------------------------------------------------
def _radix_softmax_kernel(x_ref, o_ref):
    # x_ref / o_ref: (TB, radix, G) with G = cardinality * rest on the lane axis.
    # Softmax over axis=1 (the radix axis, mapped to sublanes).
    x = x_ref[...].astype(jnp.float32)
    m = jnp.max(x, axis=1, keepdims=True)
    e = jnp.exp(x - m)
    s = jnp.sum(e, axis=1, keepdims=True)
    o_ref[...] = (e / s).astype(o_ref.dtype)


def _sigmoid_kernel(x_ref, o_ref):
    x = x_ref[...].astype(jnp.float32)
    o_ref[...] = (1.0 / (1.0 + jnp.exp(-x))).astype(o_ref.dtype)


# ----------------------------------------------------------------------------
# Tiling helper
# ----------------------------------------------------------------------------
def _pick_batch_tile(batch, row_bytes, target_bytes=2 << 20):
    """Largest batch tile that divides `batch`, keeps one block under ~2 MiB,
    and is either the full batch or a multiple of 8 (sublane friendly)."""
    if batch * row_bytes <= target_bytes:
        return batch
    cap = max(1, target_bytes // row_bytes)
    for tb in range(min(batch, cap), 0, -1):
        if batch % tb == 0 and tb % 8 == 0:
            return tb
    return batch  # fallback: single block over the whole batch (still correct)


# ----------------------------------------------------------------------------
# rSoftMax forward
# ----------------------------------------------------------------------------
def rsoftmax(x, *, radix, cardinality):
    """Pallas implementation of rSoftMax.forward.

    x: (B, ...) array, typically attention logits (B, radix*cardinality*rest, 1, 1).
    Returns (B, prod(rest_dims)) if radix > 1 (radix-major flattened order),
    otherwise sigmoid(x) with the input shape preserved.
    """
    batch = x.shape[0]
    feat = math.prod(x.shape[1:])
    itemsize = jnp.dtype(x.dtype).itemsize

    if radix > 1:
        assert feat % (cardinality * radix) == 0, (
            f"features {feat} not divisible by cardinality*radix "
            f"{cardinality * radix}")
        rest = feat // (cardinality * radix)
        group = cardinality * rest  # lane-dense last dim

        # Layout plumbing (matches torch .view(...).transpose(1, 2)):
        # (B, card, radix, rest) -> (B, radix, card, rest) -> (B, radix, group)
        xt = jnp.transpose(
            x.reshape(batch, cardinality, radix, rest), (0, 2, 1, 3)
        ).reshape(batch, radix, group)

        tb = _pick_batch_tile(batch, radix * group * itemsize)
        out = pl.pallas_call(
            _radix_softmax_kernel,
            out_shape=jax.ShapeDtypeStruct((batch, radix, group), x.dtype),
            grid=(batch // tb,),
            in_specs=[pl.BlockSpec((tb, radix, group), lambda b: (b, 0, 0))],
            out_specs=pl.BlockSpec((tb, radix, group), lambda b: (b, 0, 0)),
            compiler_params=pltpu.CompilerParams(
                dimension_semantics=("parallel",)),
        )(xt)
        # Already in the (radix, cardinality, rest)-major order that torch's
        # post-transpose reshape(batch, -1) produces.
        return out.reshape(batch, feat)

    # radix == 1: elementwise sigmoid, original shape preserved.
    flat = x.reshape(batch, feat)
    tb = _pick_batch_tile(batch, feat * itemsize)
    out = pl.pallas_call(
        _sigmoid_kernel,
        out_shape=jax.ShapeDtypeStruct((batch, feat), x.dtype),
        grid=(batch // tb,),
        in_specs=[pl.BlockSpec((tb, feat), lambda b: (b, 0))],
        out_specs=pl.BlockSpec((tb, feat), lambda b: (b, 0)),
        compiler_params=pltpu.CompilerParams(
            dimension_semantics=("parallel",)),
    )(flat)
    return out.reshape(x.shape)


# ----------------------------------------------------------------------------
# Pure-JAX reference (mirrors the PyTorch module exactly)
# ----------------------------------------------------------------------------
def rsoftmax_ref(x, *, radix, cardinality):
    batch = x.shape[0]
    if radix > 1:
        x4 = x.reshape(batch, cardinality, radix, -1)
        xt = jnp.swapaxes(x4, 1, 2)
        return jax.nn.softmax(xt, axis=1).reshape(batch, -1)
    return jax.nn.sigmoid(x)


if __name__ == "__main__":
    key = jax.random.PRNGKey(0)
    k1, k2 = jax.random.split(key)

    # Shapes consistent with SplAtConv2d usage: attention logits
    # (B, radix * cardinality * rest, 1, 1).
    B, radix, cardinality, rest = 2, 2, 2, 64
    C = radix * cardinality * rest  # 256
    x = jax.random.normal(k1, (B, C, 1, 1), jnp.float32)

    fwd = jax.jit(functools.partial(rsoftmax, radix=radix, cardinality=cardinality))
    out = jax.block_until_ready(fwd(x))
    ref = rsoftmax_ref(x, radix=radix, cardinality=cardinality)
    assert out.shape == (B, C), out.shape
    assert jnp.allclose(out, ref, atol=1e-5, rtol=1e-5), \
        float(jnp.max(jnp.abs(out - ref)))
    # Per-(b, cardinality-group, element) probabilities over radix sum to 1.
    sums = out.reshape(B, radix, cardinality * rest).sum(axis=1)
    assert jnp.allclose(sums, 1.0, atol=1e-5)

    # radix == 1 branch (sigmoid, shape preserved).
    x1 = jax.random.normal(k2, (B, 32, 1, 1), jnp.float32)
    fwd1 = jax.jit(functools.partial(rsoftmax, radix=1, cardinality=1))
    out1 = jax.block_until_ready(fwd1(x1))
    ref1 = rsoftmax_ref(x1, radix=1, cardinality=1)
    assert out1.shape == x1.shape, out1.shape
    assert jnp.allclose(out1, ref1, atol=1e-5, rtol=1e-5)

    print("KERNEL_OK")
</pallas_src>

<mosaic_0001>
module attributes {stable_mosaic.version = 11 : i64} {
  func.func @_radix_softmax_kernel(%arg0: i32, %arg1: memref<2x2x128xf32, #tpu.memory_space<vmem>>, %arg2: memref<2x2x128xf32, #tpu.memory_space<vmem>>) attributes {dimension_semantics = [#tpu.dimension_semantics<parallel>], iteration_bounds = array<i64: 1>, scalar_prefetch = 0 : i64, scratch_operands = 0 : i64, tpu.core_type = #tpu.core_type<tc>, window_params = [{transform_indices = @transform_0, window_bounds = array<i64: 2, 2, 128>}, {transform_indices = @transform_1, window_bounds = array<i64: 2, 2, 128>}]} {
    %c0 = arith.constant 0 : index
    %c0_0 = arith.constant 0 : index
    %c0_1 = arith.constant 0 : index
    %0 = vector.load %arg1[%c0, %c0_0, %c0_1] : memref<2x2x128xf32, #tpu.memory_space<vmem>>, vector<2x2x128xf32>
    %cst = arith.constant dense<0xFF800000> : vector<2x128xf32>
    %1 = vector.multi_reduction <maximumf>, %0, %cst [1] : vector<2x2x128xf32> to vector<2x128xf32>
    %2 = vector.shape_cast %1 : vector<2x128xf32> to vector<2x1x128xf32>
    %3 = vector.broadcast %2 : vector<2x1x128xf32> to vector<2x2x128xf32>
    %4 = arith.subf %0, %3 : vector<2x2x128xf32>
    %5 = math.exp %4 : vector<2x2x128xf32>
    %cst_2 = arith.constant dense<0.000000e+00> : vector<2x128xf32>
    %6 = vector.multi_reduction <add>, %5, %cst_2 [1] : vector<2x2x128xf32> to vector<2x128xf32>
    %7 = vector.shape_cast %6 : vector<2x128xf32> to vector<2x1x128xf32>
    %8 = vector.broadcast %7 : vector<2x1x128xf32> to vector<2x2x128xf32>
    %9 = arith.divf %5, %8 : vector<2x2x128xf32>
    %c0_3 = arith.constant 0 : index
    %c0_4 = arith.constant 0 : index
    %c0_5 = arith.constant 0 : index
    %10 = vector.load %arg2[%c0_3, %c0_4, %c0_5] : memref<2x2x128xf32, #tpu.memory_space<vmem>>, vector<2x2x128xf32>
    tpu.vector_store %arg2[%c0_3, %c0_4, %c0_5], %9 {strides = array<i32>} : memref<2x2x128xf32, #tpu.memory_space<vmem>>, vector<2x2x128xf32>,
    return
  }
  func.func @transform_0(%arg0: i32) -> (i32, i32, i32) {
    %c0_i32 = arith.constant 0 : i32
    %c0_i32_0 = arith.constant 0 : i32
    %c0_i32_1 = arith.constant 0 : i32
    return %arg0, %c0_i32, %c0_i32_0 : i32, i32, i32
  }
  func.func @transform_1(%arg0: i32) -> (i32, i32, i32) {
    %c0_i32 = arith.constant 0 : i32
    %c0_i32_0 = arith.constant 0 : i32
    %c0_i32_1 = arith.constant 0 : i32
    return %arg0, %c0_i32, %c0_i32_0 : i32, i32, i32
  }
}

</mosaic_0001>

<llo_original>
// kernel: rsoftmax.1
$region0: #{rsoftmax.1}
  #allocation0 [shape = 'u32[]', space=smem, size = 0x4, offset = 0x4, fixed_abs, tag = 'smem constant byte address 0x4 - core index']
  #allocation1 [shape = 'u32[144,128]{1,0:T(1,128)}', space=vmem, size = 0x12000, scoped, tag = 'internal scratch']
  %s0 = inlined_call_operand.vmem [shape: f32[2,2,128], index: 0, kind: input, shape index: {}]
  %s1 = inlined_call_operand.vmem [shape: f32[2,2,128], index: 1, kind: output, shape index: {}]
  %s2 = sld [smem:[#allocation0]]
  $region14: #{rsoftmax.1} parent=0
    _
  %s4 = ssub.s32 1, %s2
  %s5 = scalar_select 0, %s4, %s2
  // Predicated region
  $region2: #{rsoftmax.1} parent=0 // pred_check
    _
  $region3: #{rsoftmax.1} parent=0 // pred_check_branch
    %7 = sbr.rel (0) target = $region5
  $region4: #{rsoftmax.1} parent=0 // pred_region
    _
  $region5: #{rsoftmax.1} parent=0 // pred_fallthru
    _
  %v8 = vld [vmem:[%s0] sm:$0x3]
  %v9 = vld [vmem:[%s0 + $0x2] sm:$0x3]
  %vm10 = vcmask 1041408
  %v11 = vsel %vm10, %v8, -inf
  %v12 = vrot.slane %v11, 4
  %v13 = vmax.f32 %v11, %v12
  %v14 = vrot.slane %v13, 2
  %v15 = vmax.f32 %v13, %v14
  %v16 = vrot.slane %v15, 1
  %v17 = vmax.f32 %v15, %v16
  %v18 = vsel %vm10, %v9, -inf
  %v19 = vrot.slane %v18, 4
  %v20 = vmax.f32 %v18, %v19
  %v21 = vrot.slane %v20, 2
  %v22 = vmax.f32 %v20, %v21
  %v23 = vrot.slane %v22, 1
  %v24 = vmax.f32 %v22, %v23
  %v25 = vsub.f32 %v8, %v17
  %v26 = vsub.f32 %v9, %v24
  %v27 = vmul.f32 %v25, 1.442695
  %v28 = vpow.pop %v27
  %v29 = vmul.f32 %v26, 1.442695
  %v30 = vpow.pop %v29
  %v31 = vsel %vm10, %v28, 0.0
  %v32 = vrot.slane %v31, 4
  %v33 = vadd.f32 %v31, %v32
  %v34 = vrot.slane %v33, 2
  %v35 = vadd.f32 %v33, %v34
  %v36 = vrot.slane %v35, 1
  %v37 = vadd.f32 %v35, %v36
  %v38 = vsel %vm10, %v30, 0.0
  %v39 = vrot.slane %v38, 4
  %v40 = vadd.f32 %v38, %v39
  %v41 = vrot.slane %v40, 2
  %v42 = vadd.f32 %v40, %v41
  %v43 = vrot.slane %v42, 1
  %v44 = vadd.f32 %v42, %v43
  %v45 = vrcp.pop %v37
  %v46 = vmul.f32 %v28, %v45
  %v47 = vrcp.pop %v44
  %v48 = vmul.f32 %v30, %v47
  %49 = vst [vmem:[%s1] sm:$0x3] %v46
  %50 = vst [vmem:[%s1 + $0x2] sm:$0x3] %v48
  // Predicated region
  $region6: #{rsoftmax.1} parent=0 // pred_check
    _
  $region7: #{rsoftmax.1} parent=0 // pred_check_branch
    %52 = sbr.rel (0) target = $region9
  $region8: #{rsoftmax.1} parent=0 // pred_region
    _
  $region9: #{rsoftmax.1} parent=0 // pred_fallthru
    _
  // Predicated region
  $region10: #{rsoftmax.1} parent=0 // pred_check
    _
  $region11: #{rsoftmax.1} parent=0 // pred_check_branch
    %54 = sbr.rel (0) target = $region13
  $region12: #{rsoftmax.1} parent=0 // pred_region
    _
  $region13: #{rsoftmax.1} parent=0 // pred_fallthru
    _

</llo_original>
